<compile_context>
chip_gen: v7x
topology: tpu7x:2x2x1
jax: 0.10.0
libtpu: 0.0.40
codegen_flags: <defaults>
</compile_context>

<pallas_src>
import functools
import math

import jax
import jax.numpy as jnp
from jax.experimental import pallas as pl
from jax.experimental.pallas import tpu as pltpu


def _rmsnorm_kernel(x_ref, scale_ref, o_ref, *, eps, dim):
    # x_ref: (tile_rows, dim)   scale_ref: (1, dim) f32   o_ref: (tile_rows, dim)
    x = x_ref[...].astype(jnp.float32)
    # norm = ||x||_2 / sqrt(dim)  ==  sqrt(mean(x^2))
    mean_sq = jnp.sum(x * x, axis=-1, keepdims=True) * (1.0 / dim)
    norm = jnp.sqrt(mean_sq)
    # eps added OUTSIDE the sqrt, exactly as in the torch module.
    # Per-row reciprocal runs on the EUP slot; approx=False stays bit-close to
    # a true divide (compute is filler at HBM roofline anyway).
    inv = pl.reciprocal(norm + eps, approx=False)
    o_ref[...] = ((x * inv) * scale_ref[...]).astype(o_ref.dtype)


def _sublane(dtype):
    # Sublane packing: 8 rows for 32-bit, 16 for bf16/f16, 32 for int8/fp8.
    return max(8, 32 // jnp.dtype(dtype).itemsize)


def _vmem_capacity_bytes():
    """Best-effort physical VMEM query; conservative (v7x-sized) fallback."""
    try:
        info = pltpu.get_tpu_info()
        cap = getattr(info, "vmem_capacity_bytes", None)
        if cap:
            return int(cap)
    except Exception:
        pass
    return 64 << 20


def _budgets():
    """(tile budget bytes, vmem_limit bytes) — generation aware."""
    cap = _vmem_capacity_bytes()
    if cap >= (128 << 20):          # v5e / v6e: 128 MiB physical VMEM
        return 40 << 20, 96 << 20
    # v7x (64 MiB physical) or unknown: leave headroom for compiler scratch.
    return 16 << 20, 40 << 20


def _pick_tile_rows(rows, dim, dtype, vmem_budget_bytes, *, min_grid=8):
    """Largest sublane-multiple row tile whose VMEM footprint (double-buffered
    in+out blocks in the HBM dtype + the f32 upcast temporaries) fits the
    budget, then shrunk so the grid has >= min_grid steps when rows allow it
    (keeps v7x's 2 TensorCores busy and preserves pipeline overlap)."""
    itemsize = jnp.dtype(dtype).itemsize
    sub = _sublane(dtype)
    # 2 (in+out) * 2 (double-buffer) in HBM dtype  +  ~3 f32 temporaries
    # (x.astype(f32), x*x, scaled product) per row.
    bytes_per_row = 2 * 2 * dim * itemsize + 3 * dim * 4
    t = max(sub, vmem_budget_bytes // bytes_per_row)

    # Don't exceed the (sublane-rounded) total row count.
    rows_up = ((rows + sub - 1) // sub) * sub
    t = min(t, rows_up)

    # Grid-length floor: if rows is large enough, ensure >= min_grid steps.
    grid_cap = (rows // min_grid // sub) * sub
    if grid_cap >= sub:
        t = min(t, grid_cap)

    t = max(sub, (t // sub) * sub)
    # TODO(synk): for very large dim where even a single sublane-height block
    # (sub x dim, in+out, double-buffered, + f32 temps) exceeds the budget,
    # add a second grid axis over dim (strip sum-of-squares + normalize pass).
    return int(t)


def rmsnorm(x, scale, eps=1e-8, *, tile_rows=None, vmem_limit_bytes=None):
    """RMSNorm over the last axis of x. scale has shape (dim,)."""
    orig_shape = x.shape
    dim = orig_shape[-1]
    rows = math.prod(orig_shape[:-1]) if len(orig_shape) > 1 else 1
    x2d = x.reshape(rows, dim)
    # Hoist the f32 cast of scale out of the per-step body: cast once here.
    scale2d = scale.reshape(1, dim).astype(jnp.float32)

    budget, default_limit = _budgets()
    if vmem_limit_bytes is None:
        vmem_limit_bytes = default_limit
    if tile_rows is None:
        tile_rows = _pick_tile_rows(rows, dim, x.dtype, budget)

    grid = (pl.cdiv(rows, tile_rows),)  # Pallas masks the partial last block

    kernel = functools.partial(_rmsnorm_kernel, eps=eps, dim=dim)
    out2d = pl.pallas_call(
        kernel,
        out_shape=jax.ShapeDtypeStruct((rows, dim), x.dtype),
        grid_spec=pltpu.PrefetchScalarGridSpec(
            num_scalar_prefetch=0,
            grid=grid,
            in_specs=[
                pl.BlockSpec((tile_rows, dim), lambda i: (i, 0)),
                pl.BlockSpec((1, dim), lambda i: (0, 0)),
            ],
            out_specs=pl.BlockSpec((tile_rows, dim), lambda i: (i, 0)),
        ),
        compiler_params=pltpu.CompilerParams(
            dimension_semantics=("parallel",),
            vmem_limit_bytes=vmem_limit_bytes,
        ),
    )(x2d, scale2d)

    return out2d.reshape(orig_shape)


def rmsnorm_ref(x, scale, eps=1e-8):
    """Pure-JAX reference matching the PyTorch module exactly."""
    xf = x.astype(jnp.float32)
    norm = jnp.linalg.norm(xf, ord=2, axis=-1, keepdims=True) / math.sqrt(x.shape[-1])
    return (scale.astype(jnp.float32) * xf / (norm + eps)).astype(x.dtype)


if __name__ == "__main__":
    key = jax.random.PRNGKey(0)
    k0, k1 = jax.random.split(key)

    # Primary case: small, lane-dense hidden dim (multiple of 128).
    batch, seq, hidden = 2, 8, 128
    x = jax.random.normal(k0, (batch, seq, hidden), dtype=jnp.float32)
    # Deterministic parameter init: nn.Parameter(torch.ones(dim))
    scale = jnp.ones((hidden,), dtype=jnp.float32)

    out = jax.block_until_ready(rmsnorm(x, scale, eps=1e-8))
    ref = rmsnorm_ref(x, scale, eps=1e-8)
    assert out.shape == x.shape
    assert jnp.allclose(out, ref, atol=1e-5, rtol=1e-5), "mismatch vs reference (f32)"

    # Partial-last-block path: rows=300 not a multiple of tile_rows=64,
    # exercising the cdiv grid + masked writes for the final block.
    x2 = jax.random.normal(k1, (3, 100, hidden), dtype=jnp.float32)
    out2 = jax.block_until_ready(rmsnorm(x2, scale, eps=1e-8, tile_rows=64))
    ref2 = rmsnorm_ref(x2, scale, eps=1e-8)
    assert jnp.allclose(out2, ref2, atol=1e-5, rtol=1e-5), "mismatch (partial block)"

    # bf16 input stays bf16 in HBM/VMEM; f32 upcast happens inside the kernel.
    xb = x.astype(jnp.bfloat16)
    outb = jax.block_until_ready(rmsnorm(xb, scale, eps=1e-8))
    refb = rmsnorm_ref(xb, scale, eps=1e-8)
    assert jnp.allclose(outb.astype(jnp.float32), refb.astype(jnp.float32),
                        atol=3e-2, rtol=3e-2), "mismatch vs reference (bf16)"

    print("KERNEL_OK")
</pallas_src>

<mosaic_0001>
module attributes {stable_mosaic.version = 11 : i64} {
  func.func @_rmsnorm_kernel(%arg0: i32, %arg1: memref<16x128xf32, #tpu.memory_space<vmem>>, %arg2: memref<1x128xf32, #tpu.memory_space<vmem>>, %arg3: memref<16x128xf32, #tpu.memory_space<vmem>>) attributes {dimension_semantics = [#tpu.dimension_semantics<parallel>], iteration_bounds = array<i64: 1>, scalar_prefetch = 0 : i64, scratch_operands = 0 : i64, tpu.core_type = #tpu.core_type<tc>, window_params = [{transform_indices = @transform_0, window_bounds = array<i64: 16, 128>}, {pipeline_mode = #tpu.pipeline_mode<synchronous>, transform_indices = @transform_1, window_bounds = array<i64: 1, 128>}, {transform_indices = @transform_2, window_bounds = array<i64: 16, 128>}]} {
    %c0 = arith.constant 0 : index
    %c0_0 = arith.constant 0 : index
    %0 = vector.load %arg1[%c0, %c0_0] : memref<16x128xf32, #tpu.memory_space<vmem>>, vector<16x128xf32>
    %1 = arith.mulf %0, %0 : vector<16x128xf32>
    %cst = arith.constant dense<0.000000e+00> : vector<16xf32>
    %2 = vector.multi_reduction <add>, %1, %cst [1] : vector<16x128xf32> to vector<16xf32>
    %3 = vector.shape_cast %2 : vector<16xf32> to vector<16x1xf32>
    %cst_1 = arith.constant 7.812500e-03 : f32
    %4 = vector.broadcast %cst_1 : f32 to vector<16x1xf32>
    %5 = arith.mulf %3, %4 : vector<16x1xf32>
    %6 = math.sqrt %5 : vector<16x1xf32>
    %cst_2 = arith.constant 9.99999993E-9 : f32
    %7 = vector.broadcast %cst_2 : f32 to vector<16x1xf32>
    %8 = arith.addf %6, %7 : vector<16x1xf32>
    %9 = tpu.reciprocal %8 : vector<16x1xf32> -> vector<16x1xf32>
    %10 = vector.broadcast %9 : vector<16x1xf32> to vector<16x128xf32>
    %11 = arith.mulf %0, %10 : vector<16x128xf32>
    %c0_3 = arith.constant 0 : index
    %c0_4 = arith.constant 0 : index
    %12 = vector.load %arg2[%c0_3, %c0_4] : memref<1x128xf32, #tpu.memory_space<vmem>>, vector<1x128xf32>
    %13 = vector.broadcast %12 : vector<1x128xf32> to vector<16x128xf32>
    %14 = arith.mulf %11, %13 : vector<16x128xf32>
    %c0_5 = arith.constant 0 : index
    %c0_6 = arith.constant 0 : index
    %15 = vector.load %arg3[%c0_5, %c0_6] : memref<16x128xf32, #tpu.memory_space<vmem>>, vector<16x128xf32>
    tpu.vector_store %arg3[%c0_5, %c0_6], %14 {strides = array<i32>} : memref<16x128xf32, #tpu.memory_space<vmem>>, vector<16x128xf32>,
    return
  }
  func.func @transform_0(%arg0: i32) -> (i32, i32) {
    %c0_i32 = arith.constant 0 : i32
    %c0_i32_0 = arith.constant 0 : i32
    return %arg0, %c0_i32 : i32, i32
  }
  func.func @transform_1(%arg0: i32) -> (i32, i32) {
    %c0_i32 = arith.constant 0 : i32
    %c0_i32_0 = arith.constant 0 : i32
    %c0_i32_1 = arith.constant 0 : i32
    return %c0_i32, %c0_i32_0 : i32, i32
  }
  func.func @transform_2(%arg0: i32) -> (i32, i32) {
    %c0_i32 = arith.constant 0 : i32
    %c0_i32_0 = arith.constant 0 : i32
    return %arg0, %c0_i32 : i32, i32
  }
}

</mosaic_0001>

<llo_original>
// kernel: tpu_custom_call.1
$region0: #{tpu_custom_call.1}
  #allocation0 [shape = 'u32[]', space=smem, size = 0x4, offset = 0x4, fixed_abs, tag = 'smem constant byte address 0x4 - core index']
  #allocation1 [shape = 'u32[144,128]{1,0:T(1,128)}', space=vmem, size = 0x12000, scoped, tag = 'internal scratch']
  %s0 = inlined_call_operand.hbm [shape: f32[16,128], index: 0, kind: input, shape index: {}]
  %s1 = inlined_call_operand.vmem [shape: f32[1,128], index: 1, kind: input, shape index: {}]
  %s2 = inlined_call_operand.hbm [shape: f32[16,128], index: 2, kind: output, shape index: {}]
  %s3 = sld [smem:[#allocation0]]
  $region22: #{tpu_custom_call.1} parent=0
    _
  %s5 = ssub.s32 1, %s3
  %s6 = scalar_select 0, %s5, %s3
  $region1: #{tpu_custom_call.1} parent=0
    #allocation2 [shape = 'u8[8192]{0}', space=vmem, size = 0x2000, scoped, tag = 'input window, operand 0, single buffered']
    #allocation3 [shape = 's32[1]{0}', space=sflag, size = 0x4, scoped, tag = 'scoped memory for tpu_custom_call.1']
    #allocation4 [shape = 's32[1]{0}', space=sflag, size = 0x4, scoped, tag = 'scoped memory for tpu_custom_call.1']
    #allocation5 [shape = 'u8[8192]{0}', space=vmem, size = 0x2000, scoped, tag = 'output window, operand 0, single buffered']
    %7 = vsyncpa [#allocation3], 0
    %8 = vsyncpa [#allocation4], 0
    // Predicated region
    $region2: #{tpu_custom_call.1} parent=1 // pred_check
      _
    $region3: #{tpu_custom_call.1} parent=1 // pred_check_branch
      %10 = sbr.rel (0) target = $region5
    $region4: #{tpu_custom_call.1} parent=1 // pred_region
      %s12 = ssub.s32 256, 256
      %13 = vsyncadd [#allocation3], %s12
      %s14 = sshll.u32 [#allocation2], 4
      %s15 = int_to_ptr.vmem [resolvable:$true] %s14
      %20 = dma.hbm_to_vmem [thread:$0]  %s0, 256, %s15, [#allocation3], 128, 128, 8
    $region5: #{tpu_custom_call.1} parent=1 // pred_fallthru
      _
    // Predicated region
    $region6: #{tpu_custom_call.1} parent=1 // pred_check
      _
    $region7: #{tpu_custom_call.1} parent=1 // pred_check_branch
      %22 = sbr.rel (0) target = $region9
    $region8: #{tpu_custom_call.1} parent=1 // pred_region
      _
    $region9: #{tpu_custom_call.1} parent=1 // pred_fallthru
      _
    // Predicated region
    $region10: #{tpu_custom_call.1} parent=1 // pred_check
      _
    $region11: #{tpu_custom_call.1} parent=1 // pred_check_branch
      %24 = sbr.rel (0) target = $region13
    $region12: #{tpu_custom_call.1} parent=1 // pred_region
      %25 = dma.done [#allocation3], 256
    $region13: #{tpu_custom_call.1} parent=1 // pred_fallthru
      _
    %v26 = vld [vmem:[#allocation2] sm:$0xff]
    %v27 = vld [vmem:[#allocation2 + $0x8] sm:$0xff]
    %v28 = vmul.f32 %v26, %v26
    %v29 = vmul.f32 %v27, %v27
    %30 = vadd.xlane.f32.xlu0 %v28
    %v31 = vpop.xlane.xlu0 %30
    %32 = vadd.xlane.f32.xlu0 %v29
    %v33 = vpop.xlane.xlu0 %32
    %v34 = vmul.f32 %v31, 0.0078125
    %v35 = vmul.f32 %v33, 0.0078125
    %v36 = vrsqrt.pop %v34
    %v37 = vmul.f32 %v34, %v36
    %vm38 = vcmp.eq.f32.partialorder %v34, inf
    %v39 = vsel %vm38, %v34, %v37
    %vm40 = vcmp.eq.f32.partialorder %v34, 0.0
    %v41 = vand.u32 %v34, 2147483648
    %v42 = vsel %vm40, %v41, %v39
    %v43 = vrsqrt.pop %v35
    %v44 = vmul.f32 %v35, %v43
    %vm45 = vcmp.eq.f32.partialorder %v35, inf
    %v46 = vsel %vm45, %v35, %v44
    %vm47 = vcmp.eq.f32.partialorder %v35, 0.0
    %v48 = vand.u32 %v35, 2147483648
    %v49 = vsel %vm47, %v48, %v46
    %v50 = vadd.f32 %v42, 1e-08
    %v51 = vadd.f32 %v49, 1e-08
    %v52 = vrcp.pop %v50
    %v53 = vrcp.pop %v51
    %v54 = vmul.f32 %v26, %v52
    %v55 = vmul.f32 %v27, %v53
    %v56 = vld [vmem:[%s1] sm:$0x1]
    %v58 = vlaneseq
    %v59 = vshrl.u32 %v58, 7
    %v60 = vsub.s32 0, %v59
    %v61 = vrot.slane %v56, %v60
    %v63 = vmul.f32 %v54, %v61
    %v64 = vmul.f32 %v55, %v61
    %65 = vst [vmem:[#allocation5] sm:$0xff] %v63
    %66 = vst [vmem:[#allocation5 + $0x8] sm:$0xff] %v64
    // Predicated region
    $region14: #{tpu_custom_call.1} parent=1 // pred_check
      _
    $region15: #{tpu_custom_call.1} parent=1 // pred_check_branch
      %68 = sbr.rel (0) target = $region17
    $region16: #{tpu_custom_call.1} parent=1 // pred_region
      %s70 = ssub.s32 256, 256
      %71 = vsyncadd [#allocation4], %s70
      %s72 = sshll.u32 [#allocation5], 4
      %s73 = int_to_ptr.vmem [resolvable:$true] %s72
      %78 = dma.vmem_to_hbm [thread:$0]  %s73, 256, %s2, [#allocation4], 128, 128, 8
    $region17: #{tpu_custom_call.1} parent=1 // pred_fallthru
      _
    // Predicated region
    $region18: #{tpu_custom_call.1} parent=1 // pred_check
      _
    $region19: #{tpu_custom_call.1} parent=1 // pred_check_branch
      %80 = sbr.rel (0) target = $region21
    $region20: #{tpu_custom_call.1} parent=1 // pred_region
      %81 = dma.done [#allocation4], 256
    $region21: #{tpu_custom_call.1} parent=1 // pred_fallthru
      _
    %82 = vsyncpa [#allocation3], 1
    %83 = vsyncpa [#allocation4], 1

</llo_original>
